<compile_context>
chip_gen: v6e
topology: v6e:2x2x1
jax: 0.10.0
libtpu: 0.0.40
codegen_flags: <defaults>
</compile_context>

<pallas_src>
import functools

import jax
import jax.numpy as jnp
from jax.experimental import pallas as pl
from jax.experimental.pallas import tpu as pltpu

# ----------------------- model configuration (the "args") -----------------------
KS = (3, 4)            # args.kernel_sizes
CO = 8                 # args.kernel_num
V = 32                 # args.embeding_num
D = 16                 # args.embeding_dim
C = 4                  # args.output_num
N = 2                  # batch size
NKS = len(KS)
KMAX = max(KS)
H = NKS * CO           # fc hidden size      (len(Ks) * Co)
F = NKS * CO * 3       # fc input size       (len(Ks) * Co * 3)

# One packed f32 weight slab (single input DMA); every matrix section starts on an
# 8-row (sublane-tile) boundary and all lane slices start at lane 0.
WSLAB = KMAX * D                      # 64 lanes — the widest section
OFF_TBL = 0                           # (KMAX*V, KMAX*D) block-diagonal embedding table
OFF_WCONV = OFF_TBL + KMAX * V        # (KMAX*D, NKS*CO) packed conv filters
OFF_W1 = OFF_WCONV + KMAX * D         # (F, H)
OFF_W2 = OFF_W1 + F                   # (H, H)
OFF_W3 = OFF_W2 + H                   # (H, C)
OFF_BCONV = OFF_W3 + H                # one row per bias vector
OFF_B1 = OFF_BCONV + 1
OFF_B2 = OFF_B1 + 1
OFF_B3 = OFF_B2 + 1
SLAB_ROWS = -(-(OFF_B3 + 1) // 8) * 8

# Single-pass (DEFAULT precision) MXU matmuls with f32 accumulation.  Values are
# O(0.1), so bf16 operand truncation easily meets the 2e-2 verification tolerance;
# the one-hot operand of the embedding matmul is exact in bf16 regardless.
_DOT = functools.partial(jnp.dot, preferred_element_type=jnp.float32)


# --------------------------------- fused kernel ---------------------------------
def _make_fused_kernel(n, lp, l_kb, l_oie, seg_kb, seg_oie):
  """Builds the fully fused forward kernel.  All sizes are static Python ints."""
  two_n = 2 * n
  rows = two_n * lp          # both branches stacked on the sublane/batch axis

  def kernel(ids_ref, w_ref, out_ref):
    # --- nn.Embedding + conv-window unfold as ONE one-hot MXU matmul ----------
    # ids_ref[k] holds the token id of conv tap k (pre-offset by k*V on the host),
    # so OR-ing the KMAX per-tap one-hots over a (KMAX*V)-lane iota and multiplying
    # by a block-diagonal embedding table yields the unfolded activation
    # [emb[p], emb[p+1], ..., emb[p+KMAX-1]] for every position p in one matmul.
    iota = jax.lax.broadcasted_iota(jnp.int32, (rows, KMAX * V), 1)
    onehot = None
    for k in range(KMAX):
      eq = iota == ids_ref[k]                                   # (rows, KMAX*V) bool
      onehot = eq if onehot is None else jnp.logical_or(onehot, eq)
    onehot = onehot.astype(jnp.float32)
    emb_unf = _DOT(onehot, w_ref[OFF_TBL:OFF_TBL + KMAX * V, :])        # (rows, KMAX*D)

    # --- every Conv2d (both kernel sizes, both branches) as ONE MXU matmul ----
    # The Ks=3 filter is zero-padded to KMAX taps; both filters are concatenated
    # on the output-lane axis, so lanes [i*CO, (i+1)*CO) hold kernel size KS[i].
    conv = _DOT(emb_unf, w_ref[OFF_WCONV:OFF_WCONV + KMAX * D, :NKS * CO])
    conv = jnp.maximum(conv + w_ref[OFF_BCONV:OFF_BCONV + 1, :NKS * CO], 0.0)
    conv = conv.reshape(two_n, lp, NKS * CO)         # tile-aligned: lp % 8 == 0

    # --- entity / relation segment max-pools ----------------------------------
    def pools(b0, true_len, seg):
      e1_size, e2_size = seg
      xb = conv[b0:b0 + n]                           # (n, lp, NKS*CO)
      res = []
      for i, ksz in enumerate(KS):
        lout = true_len - ksz + 1
        e1 = e1_size
        e2 = lout - e2_size
        if e1 == e2:                                 # reference's degenerate guard
          e2 += 1
        assert 0 < e1 < e2 < lout, "empty pooling segment for this configuration"
        lo, hi = i * CO, (i + 1) * CO
        p1 = jnp.max(xb[:, :e1, lo:hi], axis=1)      # (n, CO) entity-1 pool
        rm = jnp.max(xb[:, e1:e2, lo:hi], axis=1)    # (n, CO) relation max
        p3 = jnp.max(xb[:, e2:lout, lo:hi], axis=1)  # (n, CO) entity-2 pool
        res.append((p1, rm, p3))
      return res

    pk = pools(0, l_kb, seg_kb)                      # kb branch  = samples [0, n)
    po = pools(n, l_oie, seg_oie)                    # oie branch = samples [n, 2n)

    # --- relation alignment + shared channel softmax, lane-concat features ----
    fk, fo = [], []
    for i in range(NKS):
      p1k, mk, p3k = pk[i]
      p1o, mo, p3o = po[i]
      # Reference computes max_{i,j} relu(rel_kb_i * rel_oie_j) (identical for both
      # branches).  Conv outputs are post-ReLU >= 0 and zero padding of the shorter
      # relation cannot raise the max, so this equals relu(max_i rk * max_j ro).
      s = jnp.maximum(mk * mo, 0.0)
      s = s - jnp.max(s, axis=1, keepdims=True)      # channel softmax
      es = jnp.exp(s)
      p2 = es / jnp.sum(es, axis=1, keepdims=True)   # shared by both branches
      fk += [p1k, p2, p3k]
      fo += [p1o, p2, p3o]
    feat = jnp.concatenate([jnp.concatenate(fk, axis=1),
                            jnp.concatenate(fo, axis=1)], axis=0)       # (2n, F)

    # --- 3-layer fc head, both branches stacked on the sublane axis -----------
    h = jnp.maximum(_DOT(feat, w_ref[OFF_W1:OFF_W1 + F, :H])
                    + w_ref[OFF_B1:OFF_B1 + 1, :H], 0.0)
    h = jnp.maximum(_DOT(h, w_ref[OFF_W2:OFF_W2 + H, :H])
                    + w_ref[OFF_B2:OFF_B2 + 1, :H], 0.0)
    # nn.Dropout is the identity in eval mode.
    out_ref[...] = (_DOT(h, w_ref[OFF_W3:OFF_W3 + H, :C])
                    + w_ref[OFF_B3:OFF_B3 + 1, :C])                     # (2n, C)

  return kernel


# ----------------------------- host-side weight packing -----------------------------
def pack_params(params):
  """Packs ALL model weights into one lane-aligned f32 slab (single kernel DMA).

  Call once; the slab is reused by every `siamese_forward` call."""
  def padw(x):
    x = x.astype(jnp.float32)
    return jnp.pad(x, ((0, 0), (0, WSLAB - x.shape[1])))

  # Block-diagonal embedding table: block k embeds the (pre-offset) tap-k token ids.
  tbl = jnp.zeros((KMAX * V, KMAX * D), jnp.float32)
  for k in range(KMAX):
    tbl = tbl.at[k * V:(k + 1) * V, k * D:(k + 1) * D].set(params["embed"])

  # Conv filters: pad each kernel size to KMAX taps, concatenate on output lanes.
  w_conv = jnp.concatenate(
      [jnp.pad(params["conv_w"][i], ((0, (KMAX - ksz) * D), (0, 0)))
       for i, ksz in enumerate(KS)], axis=1)                  # (KMAX*D, NKS*CO)
  b_conv = jnp.concatenate(params["conv_b"], axis=1)          # (1, NKS*CO)

  slab = jnp.concatenate(
      [padw(tbl), padw(w_conv), padw(params["w1"]), padw(params["w2"]),
       padw(params["w3"]), padw(b_conv), padw(params["b1"]), padw(params["b2"]),
       padw(params["b3"])], axis=0)
  return jnp.pad(slab, ((0, SLAB_ROWS - slab.shape[0]), (0, 0)))


# --------------------------------- wrapper (JAX) ---------------------------------
def siamese_forward(w_slab, input1, input2):
  """input1 / input2: [entity1_ids, relation_ids, entity2_ids], each (N, S_i) int32.

  Returns (logits_kb, logits_oie), each (N, C)."""
  ids_kb = jnp.concatenate(input1, axis=1).astype(jnp.int32)   # (n, L_kb)
  ids_oie = jnp.concatenate(input2, axis=1).astype(jnp.int32)  # (n, L_oie)
  n, l_kb = ids_kb.shape
  l_oie = ids_oie.shape[1]
  lp = -(-max(l_kb, l_oie) // 8) * 8                           # shared padded length
  ids_all = jnp.concatenate(
      [jnp.pad(ids_kb, ((0, 0), (0, lp - l_kb))),
       jnp.pad(ids_oie, ((0, 0), (0, lp - l_oie)))], axis=0)   # (2n, lp), branches stacked
  # Host-side unfold of the KMAX conv taps; tap k is pre-offset into one-hot block k.
  # Padded / out-of-range taps never enter a conv window that the pools read.
  taps = [jnp.pad(ids_all[:, k:], ((0, 0), (0, k))) + k * V for k in range(KMAX)]
  ids_unf = jnp.stack(taps, axis=0).reshape(KMAX, 2 * n * lp, 1)

  seg_kb = (input1[0].shape[1], input1[2].shape[1])
  seg_oie = (input2[0].shape[1], input2[2].shape[1])
  kernel = _make_fused_kernel(n, lp, l_kb, l_oie, seg_kb, seg_oie)

  vmem = pl.BlockSpec(memory_space=pltpu.MemorySpace.VMEM)
  # TODO(synk): for large real batches add a batch grid axis with
  # dimension_semantics=("parallel",) so both v7x TensorCores are used.
  out = pl.pallas_call(
      kernel,
      out_shape=jax.ShapeDtypeStruct((2 * n, C), jnp.float32),
      in_specs=[vmem, vmem],
      out_specs=vmem,
  )(ids_unf, w_slab)
  return out[:n], out[n:]


# ------------------------------ pure-JAX reference ------------------------------
def _ref_convolute(x_list, params):
  ids = jnp.concatenate(x_list, axis=1)
  emb = params["embed"][ids]
  n, L, _ = emb.shape
  outs = []
  for i, K in enumerate(KS):
    lo = L - K + 1
    unf = jnp.stack([emb[:, t:t + lo, :] for t in range(K)], axis=2).reshape(n, lo, K * D)
    o = jnp.einsum("nlf,fc->nlc", unf, params["conv_w"][i],
                   precision=jax.lax.Precision.HIGHEST) + params["conv_b"][i]
    outs.append(jnp.maximum(o, 0.0).transpose(0, 2, 1))        # (N, Co, L_out)
  return outs, x_list[0].shape[1], x_list[2].shape[1]


def _ref_forward(params, input1, input2):
  conv_kb, e1_kb, e2_kb = _ref_convolute(input1, params)
  conv_oie, e1_oie, e2_oie = _ref_convolute(input2, params)
  hi = functools.partial(jnp.dot, precision=jax.lax.Precision.HIGHEST)
  xk_all, xo_all = [], []
  for i in range(len(KS)):
    xk, xo = conv_kb[i], conv_oie[i]
    e1k, e2k = e1_kb, xk.shape[2] - e2_kb
    if e1k == e2k:
      e2k += 1
    e1o, e2o = e1_oie, xo.shape[2] - e2_oie
    if e1o == e2o:
      e2o += 1
    p1k = jnp.max(xk[:, :, :e1k], axis=2)
    p1o = jnp.max(xo[:, :, :e1o], axis=2)
    p3k = jnp.max(xk[:, :, e2k:], axis=2)
    p3o = jnp.max(xo[:, :, e2o:], axis=2)
    rk, ro = xk[:, :, e1k:e2k], xo[:, :, e1o:e2o]
    z = max(rk.shape[2], ro.shape[2])
    rk = jnp.pad(rk, ((0, 0), (0, 0), (0, z - rk.shape[2])))
    ro = jnp.pad(ro, ((0, 0), (0, 0), (0, z - ro.shape[2])))
    align = jnp.maximum(rk[:, :, :, None] * ro[:, :, None, :], 0.0)   # (N, Co, z, z)
    p2k = jax.nn.softmax(jnp.max(jnp.max(align, axis=3), axis=2), axis=1)
    p2o = jax.nn.softmax(jnp.max(jnp.max(align, axis=2), axis=2), axis=1)
    xk_all.append(jnp.concatenate([p1k, p2k, p3k], axis=1))
    xo_all.append(jnp.concatenate([p1o, p2o, p3o], axis=1))
  fk = jnp.concatenate(xk_all, axis=1)
  fo = jnp.concatenate(xo_all, axis=1)

  def fc(x):
    h = jnp.maximum(hi(x, params["w1"]) + params["b1"], 0.0)
    h = jnp.maximum(hi(h, params["w2"]) + params["b2"], 0.0)
    return hi(h, params["w3"]) + params["b3"]

  return fc(fk), fc(fo)


# ----------------------------------- params -----------------------------------
def init_params(key):
  ks = jax.random.split(key, 1 + 2 * len(KS) + 6)
  params = {
      "embed": jax.random.normal(ks[0], (V, D), jnp.float32) * 0.1,
      "conv_w": [],
      "conv_b": [],
  }
  for i, K in enumerate(KS):
    params["conv_w"].append(jax.random.normal(ks[1 + 2 * i], (K * D, CO), jnp.float32) * 0.1)
    params["conv_b"].append(jax.random.normal(ks[2 + 2 * i], (1, CO), jnp.float32) * 0.1)
  o = 1 + 2 * len(KS)
  params["w1"] = jax.random.normal(ks[o + 0], (F, H), jnp.float32) * 0.1
  params["b1"] = jax.random.normal(ks[o + 1], (1, H), jnp.float32) * 0.1
  params["w2"] = jax.random.normal(ks[o + 2], (H, H), jnp.float32) * 0.1
  params["b2"] = jax.random.normal(ks[o + 3], (1, H), jnp.float32) * 0.1
  params["w3"] = jax.random.normal(ks[o + 4], (H, C), jnp.float32) * 0.1
  params["b3"] = jax.random.normal(ks[o + 5], (1, C), jnp.float32) * 0.1
  return params


if __name__ == "__main__":
  key = jax.random.PRNGKey(0)
  kp, k1, k2 = jax.random.split(key, 3)
  params = init_params(kp)
  w_slab = jax.block_until_ready(pack_params(params))   # one-time weight packing

  # input1 (kb) / input2 (oie): each is [entity1_ids, relation_ids, entity2_ids]
  seg1 = (3, 5, 4)
  seg2 = (2, 6, 3)
  ks1 = jax.random.split(k1, 3)
  ks2 = jax.random.split(k2, 3)
  input1 = [jax.random.randint(ks1[j], (N, seg1[j]), 0, V, dtype=jnp.int32) for j in range(3)]
  input2 = [jax.random.randint(ks2[j], (N, seg2[j]), 0, V, dtype=jnp.int32) for j in range(3)]

  fwd = jax.jit(siamese_forward)
  out_kb, out_oie = fwd(w_slab, input1, input2)
  out_kb = jax.block_until_ready(out_kb)
  out_oie = jax.block_until_ready(out_oie)
  assert out_kb.shape == (N, C) and out_oie.shape == (N, C)

  ref_kb, ref_oie = _ref_forward(params, input1, input2)
  ok = bool(jnp.allclose(out_kb, ref_kb, atol=2e-2, rtol=2e-2)
            and jnp.allclose(out_oie, ref_oie, atol=2e-2, rtol=2e-2))
  if not ok:
    raise SystemExit("mismatch vs pure-JAX reference")
  print("KERNEL_OK")
</pallas_src>

<mosaic_0001>
module attributes {stable_mosaic.version = 11 : i64} {
  func.func @kernel(%arg0: memref<4x64x1xi32, #tpu.memory_space<vmem>>, %arg1: memref<280x64xf32, #tpu.memory_space<vmem>>, %arg2: memref<4x4xf32, #tpu.memory_space<vmem>>) attributes {dimension_semantics = [], scalar_prefetch = 0 : i64, scratch_operands = 0 : i64, tpu.core_type = #tpu.core_type<tc>} {
    %0 = tpu.iota {dimensions = array<i32: 1>} : vector<64x128xi32>
    %c0 = arith.constant 0 : index
    %c0_0 = arith.constant 0 : index
    %c0_1 = arith.constant 0 : index
    %1 = vector.load %arg0[%c0, %c0_0, %c0_1] : memref<4x64x1xi32, #tpu.memory_space<vmem>>, vector<1x64x1xi32>
    %2 = vector.shape_cast %1 : vector<1x64x1xi32> to vector<64x1xi32>
    %3 = vector.broadcast %2 : vector<64x1xi32> to vector<64x128xi32>
    %4 = arith.cmpi eq, %0, %3 : vector<64x128xi32>
    %c1 = arith.constant 1 : index
    %c0_2 = arith.constant 0 : index
    %c0_3 = arith.constant 0 : index
    %5 = vector.load %arg0[%c1, %c0_2, %c0_3] : memref<4x64x1xi32, #tpu.memory_space<vmem>>, vector<1x64x1xi32>
    %6 = vector.shape_cast %5 : vector<1x64x1xi32> to vector<64x1xi32>
    %7 = vector.broadcast %6 : vector<64x1xi32> to vector<64x128xi32>
    %8 = arith.cmpi eq, %0, %7 : vector<64x128xi32>
    %9 = arith.ori %4, %8 : vector<64x128xi1>
    %c2 = arith.constant 2 : index
    %c0_4 = arith.constant 0 : index
    %c0_5 = arith.constant 0 : index
    %10 = vector.load %arg0[%c2, %c0_4, %c0_5] : memref<4x64x1xi32, #tpu.memory_space<vmem>>, vector<1x64x1xi32>
    %11 = vector.shape_cast %10 : vector<1x64x1xi32> to vector<64x1xi32>
    %12 = vector.broadcast %11 : vector<64x1xi32> to vector<64x128xi32>
    %13 = arith.cmpi eq, %0, %12 : vector<64x128xi32>
    %14 = arith.ori %9, %13 : vector<64x128xi1>
    %c3 = arith.constant 3 : index
    %c0_6 = arith.constant 0 : index
    %c0_7 = arith.constant 0 : index
    %15 = vector.load %arg0[%c3, %c0_6, %c0_7] : memref<4x64x1xi32, #tpu.memory_space<vmem>>, vector<1x64x1xi32>
    %16 = vector.shape_cast %15 : vector<1x64x1xi32> to vector<64x1xi32>
    %17 = vector.broadcast %16 : vector<64x1xi32> to vector<64x128xi32>
    %18 = arith.cmpi eq, %0, %17 : vector<64x128xi32>
    %19 = arith.ori %14, %18 : vector<64x128xi1>
    %20 = arith.extui %19 : vector<64x128xi1> to vector<64x128xi32>
    %21 = arith.sitofp %20 : vector<64x128xi32> to vector<64x128xf32>
    %c0_8 = arith.constant 0 : index
    %c0_9 = arith.constant 0 : index
    %22 = vector.load %arg1[%c0_8, %c0_9] : memref<280x64xf32, #tpu.memory_space<vmem>>, vector<128x64xf32>
    %cst = arith.constant dense<0.000000e+00> : vector<64x64xf32>
    %23 = tpu.matmul %21, %22, %cst {dimension_numbers = #tpu.dot_dimension_numbers<[1], [0], [0], [1], [0, 0, 1, 1], [], []>} : vector<64x128xf32>, vector<128x64xf32>, vector<64x64xf32> -> vector<64x64xf32>
    %c128 = arith.constant 128 : index
    %c0_10 = arith.constant 0 : index
    %24 = vector.load %arg1[%c128, %c0_10] : memref<280x64xf32, #tpu.memory_space<vmem>>, vector<64x16xf32>
    %cst_11 = arith.constant dense<0.000000e+00> : vector<64x16xf32>
    %25 = tpu.matmul %23, %24, %cst_11 {dimension_numbers = #tpu.dot_dimension_numbers<[1], [0], [0], [1], [0, 0, 1, 1], [], []>} : vector<64x64xf32>, vector<64x16xf32>, vector<64x16xf32> -> vector<64x16xf32>
    %c272 = arith.constant 272 : index
    %c0_12 = arith.constant 0 : index
    %26 = vector.load %arg1[%c272, %c0_12] : memref<280x64xf32, #tpu.memory_space<vmem>>, vector<1x16xf32>
    %27 = vector.broadcast %26 : vector<1x16xf32> to vector<64x16xf32>
    %28 = arith.addf %25, %27 : vector<64x16xf32>
    %cst_13 = arith.constant 0.000000e+00 : f32
    %29 = vector.broadcast %cst_13 : f32 to vector<64x16xf32>
    %30 = arith.maximumf %28, %29 : vector<64x16xf32>
    %31 = vector.shape_cast %30 : vector<64x16xf32> to vector<4x16x16xf32>
    %32 = vector.extract_strided_slice %31 {offsets = [0, 0, 0], sizes = [2, 16, 16], strides = [1, 1, 1]} : vector<4x16x16xf32> to vector<2x16x16xf32>
    %33 = vector.extract_strided_slice %32 {offsets = [0, 0, 0], sizes = [2, 3, 8], strides = [1, 1, 1]} : vector<2x16x16xf32> to vector<2x3x8xf32>
    %cst_14 = arith.constant dense<0xFF800000> : vector<2x8xf32>
    %34 = vector.multi_reduction <maximumf>, %33, %cst_14 [1] : vector<2x3x8xf32> to vector<2x8xf32>
    %35 = vector.extract_strided_slice %32 {offsets = [0, 3, 0], sizes = [2, 3, 8], strides = [1, 1, 1]} : vector<2x16x16xf32> to vector<2x3x8xf32>
    %cst_15 = arith.constant dense<0xFF800000> : vector<2x8xf32>
    %36 = vector.multi_reduction <maximumf>, %35, %cst_15 [1] : vector<2x3x8xf32> to vector<2x8xf32>
    %37 = vector.extract_strided_slice %32 {offsets = [0, 6, 0], sizes = [2, 4, 8], strides = [1, 1, 1]} : vector<2x16x16xf32> to vector<2x4x8xf32>
    %cst_16 = arith.constant dense<0xFF800000> : vector<2x8xf32>
    %38 = vector.multi_reduction <maximumf>, %37, %cst_16 [1] : vector<2x4x8xf32> to vector<2x8xf32>
    %39 = vector.extract_strided_slice %32 {offsets = [0, 0, 8], sizes = [2, 3, 8], strides = [1, 1, 1]} : vector<2x16x16xf32> to vector<2x3x8xf32>
    %cst_17 = arith.constant dense<0xFF800000> : vector<2x8xf32>
    %40 = vector.multi_reduction <maximumf>, %39, %cst_17 [1] : vector<2x3x8xf32> to vector<2x8xf32>
    %41 = vector.extract_strided_slice %32 {offsets = [0, 3, 8], sizes = [2, 2, 8], strides = [1, 1, 1]} : vector<2x16x16xf32> to vector<2x2x8xf32>
    %cst_18 = arith.constant dense<0xFF800000> : vector<2x8xf32>
    %42 = vector.multi_reduction <maximumf>, %41, %cst_18 [1] : vector<2x2x8xf32> to vector<2x8xf32>
    %43 = vector.extract_strided_slice %32 {offsets = [0, 5, 8], sizes = [2, 4, 8], strides = [1, 1, 1]} : vector<2x16x16xf32> to vector<2x4x8xf32>
    %cst_19 = arith.constant dense<0xFF800000> : vector<2x8xf32>
    %44 = vector.multi_reduction <maximumf>, %43, %cst_19 [1] : vector<2x4x8xf32> to vector<2x8xf32>
    %45 = vector.extract_strided_slice %31 {offsets = [2, 0, 0], sizes = [2, 16, 16], strides = [1, 1, 1]} : vector<4x16x16xf32> to vector<2x16x16xf32>
    %46 = vector.extract_strided_slice %45 {offsets = [0, 0, 0], sizes = [2, 2, 8], strides = [1, 1, 1]} : vector<2x16x16xf32> to vector<2x2x8xf32>
    %cst_20 = arith.constant dense<0xFF800000> : vector<2x8xf32>
    %47 = vector.multi_reduction <maximumf>, %46, %cst_20 [1] : vector<2x2x8xf32> to vector<2x8xf32>
    %48 = vector.extract_strided_slice %45 {offsets = [0, 2, 0], sizes = [2, 4, 8], strides = [1, 1, 1]} : vector<2x16x16xf32> to vector<2x4x8xf32>
    %cst_21 = arith.constant dense<0xFF800000> : vector<2x8xf32>
    %49 = vector.multi_reduction <maximumf>, %48, %cst_21 [1] : vector<2x4x8xf32> to vector<2x8xf32>
    %50 = vector.extract_strided_slice %45 {offsets = [0, 6, 0], sizes = [2, 3, 8], strides = [1, 1, 1]} : vector<2x16x16xf32> to vector<2x3x8xf32>
    %cst_22 = arith.constant dense<0xFF800000> : vector<2x8xf32>
    %51 = vector.multi_reduction <maximumf>, %50, %cst_22 [1] : vector<2x3x8xf32> to vector<2x8xf32>
    %52 = vector.extract_strided_slice %45 {offsets = [0, 0, 8], sizes = [2, 2, 8], strides = [1, 1, 1]} : vector<2x16x16xf32> to vector<2x2x8xf32>
    %cst_23 = arith.constant dense<0xFF800000> : vector<2x8xf32>
    %53 = vector.multi_reduction <maximumf>, %52, %cst_23 [1] : vector<2x2x8xf32> to vector<2x8xf32>
    %54 = vector.extract_strided_slice %45 {offsets = [0, 2, 8], sizes = [2, 3, 8], strides = [1, 1, 1]} : vector<2x16x16xf32> to vector<2x3x8xf32>
    %cst_24 = arith.constant dense<0xFF800000> : vector<2x8xf32>
    %55 = vector.multi_reduction <maximumf>, %54, %cst_24 [1] : vector<2x3x8xf32> to vector<2x8xf32>
    %56 = vector.extract_strided_slice %45 {offsets = [0, 5, 8], sizes = [2, 3, 8], strides = [1, 1, 1]} : vector<2x16x16xf32> to vector<2x3x8xf32>
    %cst_25 = arith.constant dense<0xFF800000> : vector<2x8xf32>
    %57 = vector.multi_reduction <maximumf>, %56, %cst_25 [1] : vector<2x3x8xf32> to vector<2x8xf32>
    %58 = arith.mulf %36, %49 : vector<2x8xf32>
    %cst_26 = arith.constant 0.000000e+00 : f32
    %59 = vector.broadcast %cst_26 : f32 to vector<2x8xf32>
    %60 = arith.maximumf %58, %59 : vector<2x8xf32>
    %cst_27 = arith.constant dense<0xFF800000> : vector<2xf32>
    %61 = vector.multi_reduction <maximumf>, %60, %cst_27 [1] : vector<2x8xf32> to vector<2xf32>
    %62 = vector.shape_cast %61 : vector<2xf32> to vector<2x1xf32>
    %63 = vector.broadcast %62 : vector<2x1xf32> to vector<2x8xf32>
    %64 = arith.subf %60, %63 : vector<2x8xf32>
    %65 = math.exp %64 : vector<2x8xf32>
    %cst_28 = arith.constant dense<0.000000e+00> : vector<2xf32>
    %66 = vector.multi_reduction <add>, %65, %cst_28 [1] : vector<2x8xf32> to vector<2xf32>
    %67 = vector.shape_cast %66 : vector<2xf32> to vector<2x1xf32>
    %68 = vector.broadcast %67 : vector<2x1xf32> to vector<2x8xf32>
    %69 = arith.divf %65, %68 : vector<2x8xf32>
    %70 = arith.mulf %42, %55 : vector<2x8xf32>
    %cst_29 = arith.constant 0.000000e+00 : f32
    %71 = vector.broadcast %cst_29 : f32 to vector<2x8xf32>
    %72 = arith.maximumf %70, %71 : vector<2x8xf32>
    %cst_30 = arith.constant dense<0xFF800000> : vector<2xf32>
    %73 = vector.multi_reduction <maximumf>, %72, %cst_30 [1] : vector<2x8xf32> to vector<2xf32>
    %74 = vector.shape_cast %73 : vector<2xf32> to vector<2x1xf32>
    %75 = vector.broadcast %74 : vector<2x1xf32> to vector<2x8xf32>
    %76 = arith.subf %72, %75 : vector<2x8xf32>
    %77 = math.exp %76 : vector<2x8xf32>
    %cst_31 = arith.constant dense<0.000000e+00> : vector<2xf32>
    %78 = vector.multi_reduction <add>, %77, %cst_31 [1] : vector<2x8xf32> to vector<2xf32>
    %79 = vector.shape_cast %78 : vector<2xf32> to vector<2x1xf32>
    %80 = vector.broadcast %79 : vector<2x1xf32> to vector<2x8xf32>
    %81 = arith.divf %77, %80 : vector<2x8xf32>
    %82 = tpu.concatenate %34, %69, %38, %40, %81, %44 in 1 : vector<2x8xf32>, vector<2x8xf32>, vector<2x8xf32>, vector<2x8xf32>, vector<2x8xf32>, vector<2x8xf32> -> vector<2x48xf32>
    %83 = tpu.concatenate %47, %69, %51, %53, %81, %57 in 1 : vector<2x8xf32>, vector<2x8xf32>, vector<2x8xf32>, vector<2x8xf32>, vector<2x8xf32>, vector<2x8xf32> -> vector<2x48xf32>
    %84 = tpu.concatenate %82, %83 in 0 : vector<2x48xf32>, vector<2x48xf32> -> vector<4x48xf32>
    %c192 = arith.constant 192 : index
    %c0_32 = arith.constant 0 : index
    %85 = vector.load %arg1[%c192, %c0_32] : memref<280x64xf32, #tpu.memory_space<vmem>>, vector<48x16xf32>
    %cst_33 = arith.constant dense<0.000000e+00> : vector<4x16xf32>
    %86 = tpu.matmul %84, %85, %cst_33 {dimension_numbers = #tpu.dot_dimension_numbers<[1], [0], [0], [1], [0, 0, 1, 1], [], []>} : vector<4x48xf32>, vector<48x16xf32>, vector<4x16xf32> -> vector<4x16xf32>
    %c273 = arith.constant 273 : index
    %c0_34 = arith.constant 0 : index
    %87 = vector.load %arg1[%c273, %c0_34] : memref<280x64xf32, #tpu.memory_space<vmem>>, vector<1x16xf32>
    %88 = vector.broadcast %87 : vector<1x16xf32> to vector<4x16xf32>
    %89 = arith.addf %86, %88 : vector<4x16xf32>
    %cst_35 = arith.constant 0.000000e+00 : f32
    %90 = vector.broadcast %cst_35 : f32 to vector<4x16xf32>
    %91 = arith.maximumf %89, %90 : vector<4x16xf32>
    %c240 = arith.constant 240 : index
    %c0_36 = arith.constant 0 : index
    %92 = vector.load %arg1[%c240, %c0_36] : memref<280x64xf32, #tpu.memory_space<vmem>>, vector<16x16xf32>
    %cst_37 = arith.constant dense<0.000000e+00> : vector<4x16xf32>
    %93 = tpu.matmul %91, %92, %cst_37 {dimension_numbers = #tpu.dot_dimension_numbers<[1], [0], [0], [1], [0, 0, 1, 1], [], []>} : vector<4x16xf32>, vector<16x16xf32>, vector<4x16xf32> -> vector<4x16xf32>
    %c274 = arith.constant 274 : index
    %c0_38 = arith.constant 0 : index
    %94 = vector.load %arg1[%c274, %c0_38] : memref<280x64xf32, #tpu.memory_space<vmem>>, vector<1x16xf32>
    %95 = vector.broadcast %94 : vector<1x16xf32> to vector<4x16xf32>
    %96 = arith.addf %93, %95 : vector<4x16xf32>
    %cst_39 = arith.constant 0.000000e+00 : f32
    %97 = vector.broadcast %cst_39 : f32 to vector<4x16xf32>
    %98 = arith.maximumf %96, %97 : vector<4x16xf32>
    %c256 = arith.constant 256 : index
    %c0_40 = arith.constant 0 : index
    %99 = vector.load %arg1[%c256, %c0_40] : memref<280x64xf32, #tpu.memory_space<vmem>>, vector<16x4xf32>
    %cst_41 = arith.constant dense<0.000000e+00> : vector<4x4xf32>
    %100 = tpu.matmul %98, %99, %cst_41 {dimension_numbers = #tpu.dot_dimension_numbers<[1], [0], [0], [1], [0, 0, 1, 1], [], []>} : vector<4x16xf32>, vector<16x4xf32>, vector<4x4xf32> -> vector<4x4xf32>
    %c275 = arith.constant 275 : index
    %c0_42 = arith.constant 0 : index
    %101 = vector.load %arg1[%c275, %c0_42] : memref<280x64xf32, #tpu.memory_space<vmem>>, vector<1x4xf32>
    %102 = vector.broadcast %101 : vector<1x4xf32> to vector<4x4xf32>
    %103 = arith.addf %100, %102 : vector<4x4xf32>
    %c0_43 = arith.constant 0 : index
    %c0_44 = arith.constant 0 : index
    %104 = vector.load %arg2[%c0_43, %c0_44] : memref<4x4xf32, #tpu.memory_space<vmem>>, vector<4x4xf32>
    tpu.vector_store %arg2[%c0_43, %c0_44], %103 {strides = array<i32>} : memref<4x4xf32, #tpu.memory_space<vmem>>, vector<4x4xf32>,
    return
  }
}

</mosaic_0001>

<llo_original>
// kernel: siamese_forward.1
$region0: #{siamese_forward.1}
  #allocation0 [shape = 'u32[]', space=smem, size = 0x4, offset = 0x4, fixed_abs, tag = 'smem constant byte address 0x4 - core index']
  #allocation1 [shape = 'u32[144,128]{1,0:T(1,128)}', space=vmem, size = 0x12000, scoped, tag = 'internal scratch']
  %s0 = inlined_call_operand.vmem [shape: s32[4,64,1], index: 0, kind: input, shape index: {}]
  %s1 = inlined_call_operand.vmem [shape: f32[280,64], index: 1, kind: input, shape index: {}]
  %s2 = inlined_call_operand.vmem [shape: f32[4,4], index: 2, kind: output, shape index: {}]
  %s3 = sld [smem:[#allocation0]]
  $region18: #{siamese_forward.1} parent=0
    _
  %s5 = ssub.s32 1, %s3
  %s6 = scalar_select 0, %s5, %s3
  // Predicated region
  $region2: #{siamese_forward.1} parent=0 // pred_check
    _
  $region3: #{siamese_forward.1} parent=0 // pred_check_branch
    %8 = sbr.rel (0) target = $region5
  $region4: #{siamese_forward.1} parent=0 // pred_region
    _
  $region5: #{siamese_forward.1} parent=0 // pred_fallthru
    _
  // Predicated region
  $region6: #{siamese_forward.1} parent=0 // pred_check
    _
  $region7: #{siamese_forward.1} parent=0 // pred_check_branch
    %10 = sbr.rel (0) target = $region9
  $region8: #{siamese_forward.1} parent=0 // pred_region
    _
  $region9: #{siamese_forward.1} parent=0 // pred_fallthru
    _
  %v11 = vlaneseq
  %v12 = vand.u32 %v11, 127
  %v13 = vld [vmem:[%s0] sm:$0xff]
  %v14 = vld [vmem:[%s0 + $0x8] sm:$0xff]
  %v15 = vld [vmem:[%s0 + $0x10] sm:$0xff]
  %v16 = vld [vmem:[%s0 + $0x18] sm:$0xff]
  %v17 = vld [vmem:[%s0 + $0x20] sm:$0xff]
  %v18 = vld [vmem:[%s0 + $0x28] sm:$0xff]
  %v19 = vld [vmem:[%s0 + $0x30] sm:$0xff]
  %v20 = vld [vmem:[%s0 + $0x38] sm:$0xff]
  %21 = vset.pattern.permute.xlu0 0
  %22 = vperm.xlu0 %21, %v13
  %v23 = vpop.permute.xlu0 %22
  %24 = vset.pattern.permute.xlu0 0
  %25 = vperm.xlu0 %24, %v14
  %v26 = vpop.permute.xlu0 %25
  %27 = vset.pattern.permute.xlu0 0
  %28 = vperm.xlu0 %27, %v15
  %v29 = vpop.permute.xlu0 %28
  %30 = vset.pattern.permute.xlu0 0
  %31 = vperm.xlu0 %30, %v16
  %v32 = vpop.permute.xlu0 %31
  %33 = vset.pattern.permute.xlu0 0
  %34 = vperm.xlu0 %33, %v17
  %v35 = vpop.permute.xlu0 %34
  %36 = vset.pattern.permute.xlu0 0
  %37 = vperm.xlu0 %36, %v18
  %v38 = vpop.permute.xlu0 %37
  %39 = vset.pattern.permute.xlu0 0
  %40 = vperm.xlu0 %39, %v19
  %v41 = vpop.permute.xlu0 %40
  %42 = vset.pattern.permute.xlu0 0
  %43 = vperm.xlu0 %42, %v20
  %v44 = vpop.permute.xlu0 %43
  %vm45 = vcmp.eq.s32.totalorder %v12, %v23
  %vm46 = vcmp.eq.s32.totalorder %v12, %v26
  %vm47 = vcmp.eq.s32.totalorder %v12, %v29
  %vm48 = vcmp.eq.s32.totalorder %v12, %v32
  %vm49 = vcmp.eq.s32.totalorder %v12, %v35
  %vm50 = vcmp.eq.s32.totalorder %v12, %v38
  %vm51 = vcmp.eq.s32.totalorder %v12, %v41
  %vm52 = vcmp.eq.s32.totalorder %v12, %v44
  %s53 = scalar_lea.vmem %s0, 64
  %v54 = vld [vmem:[%s53] sm:$0xff]
  %v55 = vld [vmem:[%s53 + $0x8] sm:$0xff]
  %v56 = vld [vmem:[%s53 + $0x10] sm:$0xff]
  %v57 = vld [vmem:[%s53 + $0x18] sm:$0xff]
  %v58 = vld [vmem:[%s53 + $0x20] sm:$0xff]
  %v59 = vld [vmem:[%s53 + $0x28] sm:$0xff]
  %v60 = vld [vmem:[%s53 + $0x30] sm:$0xff]
  %v61 = vld [vmem:[%s53 + $0x38] sm:$0xff]
  %62 = vset.pattern.permute.xlu0 0
  %63 = vperm.xlu0 %62, %v54
  %v64 = vpop.permute.xlu0 %63
  %65 = vset.pattern.permute.xlu0 0
  %66 = vperm.xlu0 %65, %v55
  %v67 = vpop.permute.xlu0 %66
  %68 = vset.pattern.permute.xlu0 0
  %69 = vperm.xlu0 %68, %v56
  %v70 = vpop.permute.xlu0 %69
  %71 = vset.pattern.permute.xlu0 0
  %72 = vperm.xlu0 %71, %v57
  %v73 = vpop.permute.xlu0 %72
  %74 = vset.pattern.permute.xlu0 0
  %75 = vperm.xlu0 %74, %v58
  %v76 = vpop.permute.xlu0 %75
  %77 = vset.pattern.permute.xlu0 0
  %78 = vperm.xlu0 %77, %v59
  %v79 = vpop.permute.xlu0 %78
  %80 = vset.pattern.permute.xlu0 0
  %81 = vperm.xlu0 %80, %v60
  %v82 = vpop.permute.xlu0 %81
  %83 = vset.pattern.permute.xlu0 0
  %84 = vperm.xlu0 %83, %v61
  %v85 = vpop.permute.xlu0 %84
  %vm86 = vcmp.eq.s32.totalorder %v12, %v64
  %vm87 = vcmp.eq.s32.totalorder %v12, %v67
  %vm88 = vcmp.eq.s32.totalorder %v12, %v70
  %vm89 = vcmp.eq.s32.totalorder %v12, %v73
  %vm90 = vcmp.eq.s32.totalorder %v12, %v76
  %vm91 = vcmp.eq.s32.totalorder %v12, %v79
  %vm92 = vcmp.eq.s32.totalorder %v12, %v82
  %vm93 = vcmp.eq.s32.totalorder %v12, %v85
  %vm94 = vmor %vm45, %vm86
  %vm95 = vmor %vm46, %vm87
  %vm96 = vmor %vm47, %vm88
  %vm97 = vmor %vm48, %vm89
  %vm98 = vmor %vm49, %vm90
  %vm99 = vmor %vm50, %vm91
  %vm100 = vmor %vm51, %vm92
  %vm101 = vmor %vm52, %vm93
  %s102 = scalar_lea.vmem %s0, 128
  %v103 = vld [vmem:[%s102] sm:$0xff]
  %v104 = vld [vmem:[%s102 + $0x8] sm:$0xff]
  %v105 = vld [vmem:[%s102 + $0x10] sm:$0xff]
  %v106 = vld [vmem:[%s102 + $0x18] sm:$0xff]
  %v107 = vld [vmem:[%s102 + $0x20] sm:$0xff]
  %v108 = vld [vmem:[%s102 + $0x28] sm:$0xff]
  %v109 = vld [vmem:[%s102 + $0x30] sm:$0xff]
  %v110 = vld [vmem:[%s102 + $0x38] sm:$0xff]
  %111 = vset.pattern.permute.xlu0 0
  %112 = vperm.xlu0 %111, %v103
  %v113 = vpop.permute.xlu0 %112
  %114 = vset.pattern.permute.xlu0 0
  %115 = vperm.xlu0 %114, %v104
  %v116 = vpop.permute.xlu0 %115
  %117 = vset.pattern.permute.xlu0 0
  %118 = vperm.xlu0 %117, %v105
  %v119 = vpop.permute.xlu0 %118
  %120 = vset.pattern.permute.xlu0 0
  %121 = vperm.xlu0 %120, %v106
  %v122 = vpop.permute.xlu0 %121
  %123 = vset.pattern.permute.xlu0 0
  %124 = vperm.xlu0 %123, %v107
  %v125 = vpop.permute.xlu0 %124
  %126 = vset.pattern.permute.xlu0 0
  %127 = vperm.xlu0 %126, %v108
  %v128 = vpop.permute.xlu0 %127
  %129 = vset.pattern.permute.xlu0 0
  %130 = vperm.xlu0 %129, %v109
  %v131 = vpop.permute.xlu0 %130
  %132 = vset.pattern.permute.xlu0 0
  %133 = vperm.xlu0 %132, %v110
  %v134 = vpop.permute.xlu0 %133
  %vm135 = vcmp.eq.s32.totalorder %v12, %v113
  %vm136 = vcmp.eq.s32.totalorder %v12, %v116
  %vm137 = vcmp.eq.s32.totalorder %v12, %v119
  %vm138 = vcmp.eq.s32.totalorder %v12, %v122
  %vm139 = vcmp.eq.s32.totalorder %v12, %v125
  %vm140 = vcmp.eq.s32.totalorder %v12, %v128
  %vm141 = vcmp.eq.s32.totalorder %v12, %v131
  %vm142 = vcmp.eq.s32.totalorder %v12, %v134
  %vm143 = vmor %vm94, %vm135
  %vm144 = vmor %vm95, %vm136
  %vm145 = vmor %vm96, %vm137
  %vm146 = vmor %vm97, %vm138
  %vm147 = vmor %vm98, %vm139
  %vm148 = vmor %vm99, %vm140
  %vm149 = vmor %vm100, %vm141
  %vm150 = vmor %vm101, %vm142
  %s151 = scalar_lea.vmem %s0, 192
  %v152 = vld [vmem:[%s151] sm:$0xff]
  %v153 = vld [vmem:[%s151 + $0x8] sm:$0xff]
  %v154 = vld [vmem:[%s151 + $0x10] sm:$0xff]
  %v155 = vld [vmem:[%s151 + $0x18] sm:$0xff]
  %v156 = vld [vmem:[%s151 + $0x20] sm:$0xff]
  %v157 = vld [vmem:[%s151 + $0x28] sm:$0xff]
  %v158 = vld [vmem:[%s151 + $0x30] sm:$0xff]
  %v159 = vld [vmem:[%s151 + $0x38] sm:$0xff]
  %160 = vset.pattern.permute.xlu0 0
  %161 = vperm.xlu0 %160, %v152
  %v162 = vpop.permute.xlu0 %161
  %163 = vset.pattern.permute.xlu0 0
  %164 = vperm.xlu0 %163, %v153
  %v165 = vpop.permute.xlu0 %164
  %166 = vset.pattern.permute.xlu0 0
  %167 = vperm.xlu0 %166, %v154
  %v168 = vpop.permute.xlu0 %167
  %169 = vset.pattern.permute.xlu0 0
  %170 = vperm.xlu0 %169, %v155
  %v171 = vpop.permute.xlu0 %170
  %172 = vset.pattern.permute.xlu0 0
  %173 = vperm.xlu0 %172, %v156
  %v174 = vpop.permute.xlu0 %173
  %175 = vset.pattern.permute.xlu0 0
  %176 = vperm.xlu0 %175, %v157
  %v177 = vpop.permute.xlu0 %176
  %178 = vset.pattern.permute.xlu0 0
  %179 = vperm.xlu0 %178, %v158
  %v180 = vpop.permute.xlu0 %179
  %181 = vset.pattern.permute.xlu0 0
  %182 = vperm.xlu0 %181, %v159
  %v183 = vpop.permute.xlu0 %182
  %vm184 = vcmp.eq.s32.totalorder %v12, %v162
  %vm185 = vcmp.eq.s32.totalorder %v12, %v165
  %vm186 = vcmp.eq.s32.totalorder %v12, %v168
  %vm187 = vcmp.eq.s32.totalorder %v12, %v171
  %vm188 = vcmp.eq.s32.totalorder %v12, %v174
  %vm189 = vcmp.eq.s32.totalorder %v12, %v177
  %vm190 = vcmp.eq.s32.totalorder %v12, %v180
  %vm191 = vcmp.eq.s32.totalorder %v12, %v183
  %vm192 = vmor %vm143, %vm184
  %vm193 = vmor %vm144, %vm185
  %vm194 = vmor %vm145, %vm186
  %vm195 = vmor %vm146, %vm187
  %vm196 = vmor %vm147, %vm188
  %vm197 = vmor %vm148, %vm189
  %vm198 = vmor %vm149, %vm190
  %vm199 = vmor %vm150, %vm191
  %v200 = vsel %vm192, 1, 0
  %v201 = vsel %vm193, 1, 0
  %v202 = vsel %vm194, 1, 0
  %v203 = vsel %vm195, 1, 0
  %v204 = vsel %vm196, 1, 0
  %v205 = vsel %vm197, 1, 0
  %v206 = vsel %vm198, 1, 0
  %v207 = vsel %vm199, 1, 0
  %v208 = vcvt.s32.f32 %v200
  %v209 = vcvt.s32.f32 %v201
  %v210 = vcvt.s32.f32 %v202
  %v211 = vcvt.s32.f32 %v203
  %v212 = vcvt.s32.f32 %v204
  %v213 = vcvt.s32.f32 %v205
  %v214 = vcvt.s32.f32 %v206
  %v215 = vcvt.s32.f32 %v207
  %v216 = vld [vmem:[%s1] sm:$0xff]
  %v217 = vld [vmem:[%s1 + $0x8] sm:$0xff]
  %v218 = vld [vmem:[%s1 + $0x10] sm:$0xff]
  %v219 = vld [vmem:[%s1 + $0x18] sm:$0xff]
  %v220 = vld [vmem:[%s1 + $0x20] sm:$0xff]
  %v221 = vld [vmem:[%s1 + $0x28] sm:$0xff]
  %v222 = vld [vmem:[%s1 + $0x30] sm:$0xff]
  %v223 = vld [vmem:[%s1 + $0x38] sm:$0xff]
  %v224 = vld [vmem:[%s1 + $0x40] sm:$0xff]
  %v225 = vld [vmem:[%s1 + $0x48] sm:$0xff]
  %v226 = vld [vmem:[%s1 + $0x50] sm:$0xff]
  %v227 = vld [vmem:[%s1 + $0x58] sm:$0xff]
  %v228 = vld [vmem:[%s1 + $0x60] sm:$0xff]
  %v229 = vld [vmem:[%s1 + $0x68] sm:$0xff]
  %v230 = vld [vmem:[%s1 + $0x70] sm:$0xff]
  %v231 = vld [vmem:[%s1 + $0x78] sm:$0xff]
  %232 = vmatprep.subr.mxu0 0.0
  %233 = vmatpush1.msra.mxu0 %v231
  %234 = vmatprep.subr.mxu0 0.0
  %235 = vmatpush1.msra.mxu0 %v230
  %236 = vmatprep.subr.mxu0 0.0
  %237 = vmatpush1.msra.mxu0 %v229
  %238 = vmatprep.subr.mxu0 0.0
  %239 = vmatpush1.msra.mxu0 %v228
  %240 = vmatprep.subr.mxu0 0.0
  %241 = vmatpush1.msra.mxu0 %v227
  %242 = vmatprep.subr.mxu0 0.0
  %243 = vmatpush1.msra.mxu0 %v226
  %244 = vmatprep.subr.mxu0 0.0
  %245 = vmatpush1.msra.mxu0 %v225
  %246 = vmatprep.subr.mxu0 0.0
  %247 = vmatpush1.msra.mxu0 %v224
  %248 = vmatprep.subr.mxu0 0.0
  %249 = vmatpush1.msra.mxu0 %v223
  %250 = vmatprep.subr.mxu0 0.0
  %251 = vmatpush1.msra.mxu0 %v222
  %252 = vmatprep.subr.mxu0 0.0
  %253 = vmatpush1.msra.mxu0 %v221
  %254 = vmatprep.subr.mxu0 0.0
  %255 = vmatpush1.msra.mxu0 %v220
  %256 = vmatprep.subr.mxu0 0.0
  %257 = vmatpush1.msra.mxu0 %v219
  %258 = vmatprep.subr.mxu0 0.0
  %259 = vmatpush1.msra.mxu0 %v218
  %260 = vmatprep.subr.mxu0 0.0
  %261 = vmatpush1.msra.mxu0 %v217
  %262 = vmatprep.subr.mxu0 0.0
  %263 = vmatpush1.msra.mxu0 %v216
  %264 = vmatprep.subr.mxu0 0.0
  %265 = vmatpush2.msra.mxu0 0.0
  %266 = vmatprep.subr.mxu0 0.0
  %267 = vmatpush2.msra.mxu0 0.0
  %268 = vmatprep.subr.mxu0 0.0
  %269 = vmatpush2.msra.mxu0 0.0
  %270 = vmatprep.subr.mxu0 0.0
  %271 = vmatpush2.msra.mxu0 0.0
  %272 = vmatprep.subr.mxu0 0.0
  %273 = vmatpush2.msra.mxu0 0.0
  %274 = vmatprep.subr.mxu0 0.0
  %275 = vmatpush2.msra.mxu0 0.0
  %276 = vmatprep.subr.mxu0 0.0
  %277 = vmatpush2.msra.mxu0 0.0
  %278 = vmatprep.subr.mxu0 0.0
  %279 = vmatpush2.msra.mxu0 0.0
  %280 = vmatprep.subr.mxu0 0.0
  %281 = vmatpush2.msra.mxu0 0.0
  %282 = vmatprep.subr.mxu0 0.0
  %283 = vmatpush2.msra.mxu0 0.0
  %284 = vmatprep.subr.mxu0 0.0
  %285 = vmatpush2.msra.mxu0 0.0
  %286 = vmatprep.subr.mxu0 0.0
  %287 = vmatpush2.msra.mxu0 0.0
  %288 = vmatprep.subr.mxu0 0.0
  %289 = vmatpush2.msra.mxu0 0.0
  %290 = vmatprep.subr.mxu0 0.0
  %291 = vmatpush2.msra.mxu0 0.0
  %292 = vmatprep.subr.mxu0 0.0
  %293 = vmatpush2.msra.mxu0 0.0
  %294 = vmatprep.subr.mxu0 0.0
  %295 = vmatpush2.msra.mxu0 0.0
  %296 = vmatprep.mubr.f32.mxu0 0.0
  %297 = vmatmul.mubr.f32.gmra.mxu0 %v208
  %v298 = vpop.f32.mrf.mxu0
  %v299 = vadd.f32 0.0, %v298
  %v300 = vpop.f32.mrf.mxu0
  %301 = vmatprep.mubr.f32.mxu0 0.0
  %302 = vmatmul.mubr.f32.gmra.mxu0 %v209
  %v303 = vpop.f32.mrf.mxu0
  %v304 = vadd.f32 0.0, %v303
  %v305 = vpop.f32.mrf.mxu0
  %306 = vmatprep.mubr.f32.mxu0 0.0
  %307 = vmatmul.mubr.f32.gmra.mxu0 %v210
  %v308 = vpop.f32.mrf.mxu0
  %v309 = vadd.f32 0.0, %v308
  %v310 = vpop.f32.mrf.mxu0
  %311 = vmatprep.mubr.f32.mxu0 0.0
  %312 = vmatmul.mubr.f32.gmra.mxu0 %v211
  %v313 = vpop.f32.mrf.mxu0
  %v314 = vadd.f32 0.0, %v313
  %v315 = vpop.f32.mrf.mxu0
  %316 = vmatprep.mubr.f32.mxu0 0.0
  %317 = vmatmul.mubr.f32.gmra.mxu0 %v212
  %v318 = vpop.f32.mrf.mxu0
  %v319 = vadd.f32 0.0, %v318
  %v320 = vpop.f32.mrf.mxu0
  %321 = vmatprep.mubr.f32.mxu0 0.0
  %322 = vmatmul.mubr.f32.gmra.mxu0 %v213
  %v323 = vpop.f32.mrf.mxu0
  %v324 = vadd.f32 0.0, %v323
  %v325 = vpop.f32.mrf.mxu0
  %326 = vmatprep.mubr.f32.mxu0 0.0
  %327 = vmatmul.mubr.f32.gmra.mxu0 %v214
  %v328 = vpop.f32.mrf.mxu0
  %v329 = vadd.f32 0.0, %v328
  %v330 = vpop.f32.mrf.mxu0
  %331 = vmatprep.mubr.f32.mxu0 0.0
  %332 = vmatmul.mubr.f32.gmra.mxu0 %v215
  %v333 = vpop.f32.mrf.mxu0
  %v334 = vadd.f32 0.0, %v333
  %v335 = vpop.f32.mrf.mxu0
  %336 = vdwg.mxu0
  %v337 = vld [vmem:[%s1 + $0x80] sm:$0xff]
  %v338 = vld [vmem:[%s1 + $0x88] sm:$0xff]
  %v339 = vld [vmem:[%s1 + $0x90] sm:$0xff]
  %v340 = vld [vmem:[%s1 + $0x98] sm:$0xff]
  %v341 = vld [vmem:[%s1 + $0xa0] sm:$0xff]
  %v342 = vld [vmem:[%s1 + $0xa8] sm:$0xff]
  %v343 = vld [vmem:[%s1 + $0xb0] sm:$0xff]
  %v344 = vld [vmem:[%s1 + $0xb8] sm:$0xff]
  %v345 = vld [vmem:[%s1 + $0x110] sm:$0x1]
  %v346 = vlaneseq
  %v347 = vshrl.u32 %v346, 7
  %v348 = vsub.s32 0, %v347
  %v349 = vrot.slane %v345, %v348
  %vm350 = vcmask 523264
  %v352 = vsel %vm350, %v299, 0
  %v355 = vsel %vm350, %v304, 0
  %v358 = vsel %vm350, %v309, 0
  %v361 = vsel %vm350, %v314, 0
  %v364 = vsel %vm350, %v319, 0
  %v367 = vsel %vm350, %v324, 0
  %v370 = vsel %vm350, %v329, 0
  %v373 = vsel %vm350, %v334, 0
  %375 = vmatprep.subr.mxu0 0.0
  %376 = vmatpush1.msra.mxu0 0.0
  %377 = vmatprep.subr.mxu0 0.0
  %378 = vmatpush1.msra.mxu0 0.0
  %379 = vmatprep.subr.mxu0 0.0
  %380 = vmatpush1.msra.mxu0 0.0
  %381 = vmatprep.subr.mxu0 0.0
  %382 = vmatpush1.msra.mxu0 0.0
  %383 = vmatprep.subr.mxu0 0.0
  %384 = vmatpush1.msra.mxu0 0.0
  %385 = vmatprep.subr.mxu0 0.0
  %386 = vmatpush1.msra.mxu0 0.0
  %387 = vmatprep.subr.mxu0 0.0
  %388 = vmatpush1.msra.mxu0 0.0
  %389 = vmatprep.subr.mxu0 0.0
  %390 = vmatpush1.msra.mxu0 0.0
  %391 = vmatprep.subr.mxu0 0.0
  %392 = vmatpush1.msra.mxu0 %v344
  %393 = vmatprep.subr.mxu0 0.0
  %394 = vmatpush1.msra.mxu0 %v343
  %395 = vmatprep.subr.mxu0 0.0
  %396 = vmatpush1.msra.mxu0 %v342
  %397 = vmatprep.subr.mxu0 0.0
  %398 = vmatpush1.msra.mxu0 %v341
  %399 = vmatprep.subr.mxu0 0.0
  %400 = vmatpush1.msra.mxu0 %v340
  %401 = vmatprep.subr.mxu0 0.0
  %402 = vmatpush1.msra.mxu0 %v339
  %403 = vmatprep.subr.mxu0 0.0
  %404 = vmatpush1.msra.mxu0 %v338
  %405 = vmatprep.subr.mxu0 0.0
  %406 = vmatpush1.msra.mxu0 %v337
  %407 = vmatprep.subr.mxu0 0.0
  %408 = vmatpush2.msra.mxu0 0.0
  %409 = vmatprep.subr.mxu0 0.0
  %410 = vmatpush2.msra.mxu0 0.0
  %411 = vmatprep.subr.mxu0 0.0
  %412 = vmatpush2.msra.mxu0 0.0
  %413 = vmatprep.subr.mxu0 0.0
  %414 = vmatpush2.msra.mxu0 0.0
  %415 = vmatprep.subr.mxu0 0.0
  %416 = vmatpush2.msra.mxu0 0.0
  %417 = vmatprep.subr.mxu0 0.0
  %418 = vmatpush2.msra.mxu0 0.0
  %419 = vmatprep.subr.mxu0 0.0
  %420 = vmatpush2.msra.mxu0 0.0
  %421 = vmatprep.subr.mxu0 0.0
  %422 = vmatpush2.msra.mxu0 0.0
  %423 = vmatprep.subr.mxu0 0.0
  %424 = vmatpush2.msra.mxu0 0.0
  %425 = vmatprep.subr.mxu0 0.0
  %426 = vmatpush2.msra.mxu0 0.0
  %427 = vmatprep.subr.mxu0 0.0
  %428 = vmatpush2.msra.mxu0 0.0
  %429 = vmatprep.subr.mxu0 0.0
  %430 = vmatpush2.msra.mxu0 0.0
  %431 = vmatprep.subr.mxu0 0.0
  %432 = vmatpush2.msra.mxu0 0.0
  %433 = vmatprep.subr.mxu0 0.0
  %434 = vmatpush2.msra.mxu0 0.0
  %435 = vmatprep.subr.mxu0 0.0
  %436 = vmatpush2.msra.mxu0 0.0
  %437 = vmatprep.subr.mxu0 0.0
  %438 = vmatpush2.msra.mxu0 0.0
  %439 = vmatprep.mubr.f32.mxu0 0.0
  %440 = vmatmul.mubr.f32.gmra.mxu0 %v352
  %v441 = vpop.f32.mrf.mxu0
  %v442 = vadd.f32 %v349, %v441
  %v443 = vpop.f32.mrf.mxu0
  %444 = vmatprep.mubr.f32.mxu0 0.0
  %445 = vmatmul.mubr.f32.gmra.mxu0 %v355
  %v446 = vpop.f32.mrf.mxu0
  %v447 = vadd.f32 %v349, %v446
  %v448 = vpop.f32.mrf.mxu0
  %449 = vmatprep.mubr.f32.mxu0 0.0
  %450 = vmatmul.mubr.f32.gmra.mxu0 %v358
  %v451 = vpop.f32.mrf.mxu0
  %v452 = vadd.f32 %v349, %v451
  %v453 = vpop.f32.mrf.mxu0
  %454 = vmatprep.mubr.f32.mxu0 0.0
  %455 = vmatmul.mubr.f32.gmra.mxu0 %v361
  %v456 = vpop.f32.mrf.mxu0
  %v457 = vadd.f32 %v349, %v456
  %v458 = vpop.f32.mrf.mxu0
  %459 = vmatprep.mubr.f32.mxu0 0.0
  %460 = vmatmul.mubr.f32.gmra.mxu0 %v364
  %v461 = vpop.f32.mrf.mxu0
  %v462 = vadd.f32 %v349, %v461
  %v463 = vpop.f32.mrf.mxu0
  %464 = vmatprep.mubr.f32.mxu0 0.0
  %465 = vmatmul.mubr.f32.gmra.mxu0 %v367
  %v466 = vpop.f32.mrf.mxu0
  %v467 = vadd.f32 %v349, %v466
  %v468 = vpop.f32.mrf.mxu0
  %469 = vmatprep.mubr.f32.mxu0 0.0
  %470 = vmatmul.mubr.f32.gmra.mxu0 %v370
  %v471 = vpop.f32.mrf.mxu0
  %v472 = vadd.f32 %v349, %v471
  %v473 = vpop.f32.mrf.mxu0
  %474 = vmatprep.mubr.f32.mxu0 0.0
  %475 = vmatmul.mubr.f32.gmra.mxu0 %v373
  %v476 = vpop.f32.mrf.mxu0
  %v477 = vadd.f32 %v349, %v476
  %v478 = vpop.f32.mrf.mxu0
  %479 = vdwg.mxu0
  %v480 = vmax.f32 %v442, 0.0
  %v481 = vmax.f32 %v447, 0.0
  %v482 = vmax.f32 %v452, 0.0
  %v483 = vmax.f32 %v457, 0.0
  %v484 = vmax.f32 %v462, 0.0
  %v485 = vmax.f32 %v467, 0.0
  %v486 = vmax.f32 %v472, 0.0
  %v487 = vmax.f32 %v477, 0.0
  %vm488 = vcmask 59392
  %v489 = vsel %vm488, %v480, -inf
  %v490 = vrot.slane %v489, 4
  %v491 = vmax.f32 %v489, %v490
  %v492 = vrot.slane %v491, 2
  %v493 = vmax.f32 %v491, %v492
  %v494 = vrot.slane %v493, 1
  %v495 = vmax.f32 %v493, %v494
  %v496 = vsel %vm488, %v482, -inf
  %v497 = vrot.slane %v496, 4
  %v498 = vmax.f32 %v496, %v497
  %v499 = vrot.slane %v498, 2
  %v500 = vmax.f32 %v498, %v499
  %v501 = vrot.slane %v500, 1
  %v502 = vmax.f32 %v500, %v501
  %vm503 = vcmask 62467
  %v504 = vsel %vm503, %v480, -inf
  %v505 = vrot.slane %v504, 4
  %v506 = vmax.f32 %v504, %v505
  %v507 = vrot.slane %v506, 2
  %v508 = vmax.f32 %v506, %v507
  %v509 = vrot.slane %v508, 1
  %v510 = vmax.f32 %v508, %v509
  %v511 = vsel %vm503, %v482, -inf
  %v512 = vrot.slane %v511, 4
  %v513 = vmax.f32 %v511, %v512
  %v514 = vrot.slane %v513, 2
  %v515 = vmax.f32 %v513, %v514
  %v516 = vrot.slane %v515, 1
  %v517 = vmax.f32 %v515, %v516
  %vm518 = vcmask 64518
  %v519 = vsel %vm518, %v480, -inf
  %vm520 = vcmask 58368
  %v521 = vsel %vm520, %v481, -inf
  %v522 = vmax.f32 %v519, %v521
  %v523 = vrot.slane %v522, 4
  %v524 = vmax.f32 %v522, %v523
  %v525 = vrot.slane %v524, 2
  %v526 = vmax.f32 %v524, %v525
  %v527 = vrot.slane %v526, 1
  %v528 = vmax.f32 %v526, %v527
  %v529 = vsel %vm518, %v482, -inf
  %v530 = vsel %vm520, %v483, -inf
  %v531 = vmax.f32 %v529, %v530
  %v532 = vrot.slane %v531, 4
  %v533 = vmax.f32 %v531, %v532
  %v534 = vrot.slane %v533, 2
  %v535 = vmax.f32 %v533, %v534
  %v536 = vrot.slane %v535, 1
  %v537 = vmax.f32 %v535, %v536
  %vm538 = vcmask 124992
  %v539 = vsel %vm538, %v480, -inf
  %v540 = vrot.slane %v539, 4
  %v541 = vmax.f32 %v539, %v540
  %v542 = vrot.slane %v541, 2
  %v543 = vmax.f32 %v541, %v542
  %v544 = vrot.slane %v543, 1
  %v545 = vmax.f32 %v543, %v544
  %v546 = vsel %vm538, %v482, -inf
  %v547 = vrot.slane %v546, 4
  %v548 = vmax.f32 %v546, %v547
  %v549 = vrot.slane %v548, 2
  %v550 = vmax.f32 %v548, %v549
  %v551 = vrot.slane %v550, 1
  %v552 = vmax.f32 %v550, %v551
  %vm553 = vcmask 127043
  %v554 = vsel %vm553, %v480, -inf
  %v555 = vrot.slane %v554, 4
  %v556 = vmax.f32 %v554, %v555
  %v557 = vrot.slane %v556, 2
  %v558 = vmax.f32 %v556, %v557
  %v559 = vrot.slane %v558, 1
  %v560 = vmax.f32 %v558, %v559
  %v561 = vsel %vm553, %v482, -inf
  %v562 = vrot.slane %v561, 4
  %v563 = vmax.f32 %v561, %v562
  %v564 = vrot.slane %v563, 2
  %v565 = vmax.f32 %v563, %v564
  %v566 = vrot.slane %v565, 1
  %v567 = vmax.f32 %v565, %v566
  %vm568 = vcmask 130117
  %v569 = vsel %vm568, %v480, -inf
  %vm570 = vcmask 122944
  %v571 = vsel %vm570, %v481, -inf
  %v572 = vmax.f32 %v569, %v571
  %v573 = vrot.slane %v572, 4
  %v574 = vmax.f32 %v572, %v573
  %v575 = vrot.slane %v574, 2
  %v576 = vmax.f32 %v574, %v575
  %v577 = vrot.slane %v576, 1
  %v578 = vmax.f32 %v576, %v577
  %v579 = vsel %vm568, %v482, -inf
  %v580 = vsel %vm570, %v483, -inf
  %v581 = vmax.f32 %v579, %v580
  %v582 = vrot.slane %v581, 4
  %v583 = vmax.f32 %v581, %v582
  %v584 = vrot.slane %v583, 2
  %v585 = vmax.f32 %v583, %v584
  %v586 = vrot.slane %v585, 1
  %v587 = vmax.f32 %v585, %v586
  %v588 = vsel %vm520, %v484, -inf
  %v589 = vrot.slane %v588, 4
  %v590 = vmax.f32 %v588, %v589
  %v591 = vrot.slane %v590, 2
  %v592 = vmax.f32 %v590, %v591
  %v593 = vrot.slane %v592, 1
  %v594 = vmax.f32 %v592, %v593
  %v595 = vsel %vm520, %v486, -inf
  %v596 = vrot.slane %v595, 4
  %v597 = vmax.f32 %v595, %v596
  %v598 = vrot.slane %v597, 2
  %v599 = vmax.f32 %v597, %v598
  %v600 = vrot.slane %v599, 1
  %v601 = vmax.f32 %v599, %v600
  %vm602 = vcmask 62466
  %v603 = vsel %vm602, %v484, -inf
  %v604 = vrot.slane %v603, 4
  %v605 = vmax.f32 %v603, %v604
  %v606 = vrot.slane %v605, 2
  %v607 = vmax.f32 %v605, %v606
  %v608 = vrot.slane %v607, 1
  %v609 = vmax.f32 %v607, %v608
  %v610 = vsel %vm602, %v486, -inf
  %v611 = vrot.slane %v610, 4
  %v612 = vmax.f32 %v610, %v611
  %v613 = vrot.slane %v612, 2
  %v614 = vmax.f32 %v612, %v613
  %v615 = vrot.slane %v614, 1
  %v616 = vmax.f32 %v614, %v615
  %v617 = vsel %vm518, %v484, -inf
  %vm618 = vcmask 57344
  %v619 = vsel %vm618, %v485, -inf
  %v620 = vmax.f32 %v617, %v619
  %v621 = vrot.slane %v620, 4
  %v622 = vmax.f32 %v620, %v621
  %v623 = vrot.slane %v622, 2
  %v624 = vmax.f32 %v622, %v623
  %v625 = vrot.slane %v624, 1
  %v626 = vmax.f32 %v624, %v625
  %v627 = vsel %vm518, %v486, -inf
  %v628 = vsel %vm618, %v487, -inf
  %v629 = vmax.f32 %v627, %v628
  %v630 = vrot.slane %v629, 4
  %v631 = vmax.f32 %v629, %v630
  %v632 = vrot.slane %v631, 2
  %v633 = vmax.f32 %v631, %v632
  %v634 = vrot.slane %v633, 1
  %v635 = vmax.f32 %v633, %v634
  %vm636 = vcmask 123968
  %v637 = vsel %vm636, %v484, -inf
  %v638 = vrot.slane %v637, 4
  %v639 = vmax.f32 %v637, %v638
  %v640 = vrot.slane %v639, 2
  %v641 = vmax.f32 %v639, %v640
  %v642 = vrot.slane %v641, 1
  %v643 = vmax.f32 %v641, %v642
  %v644 = vsel %vm636, %v486, -inf
  %v645 = vrot.slane %v644, 4
  %v646 = vmax.f32 %v644, %v645
  %v647 = vrot.slane %v646, 2
  %v648 = vmax.f32 %v646, %v647
  %v649 = vrot.slane %v648, 1
  %v650 = vmax.f32 %v648, %v649
  %vm651 = vcmask 127042
  %v652 = vsel %vm651, %v484, -inf
  %v653 = vrot.slane %v652, 4
  %v654 = vmax.f32 %v652, %v653
  %v655 = vrot.slane %v654, 2
  %v656 = vmax.f32 %v654, %v655
  %v657 = vrot.slane %v656, 1
  %v658 = vmax.f32 %v656, %v657
  %v659 = vsel %vm651, %v486, -inf
  %v660 = vrot.slane %v659, 4
  %v661 = vmax.f32 %v659, %v660
  %v662 = vrot.slane %v661, 2
  %v663 = vmax.f32 %v661, %v662
  %v664 = vrot.slane %v663, 1
  %v665 = vmax.f32 %v663, %v664
  %v666 = vsel %vm568, %v484, -inf
  %v667 = vrot.slane %v666, 4
  %v668 = vmax.f32 %v666, %v667
  %v669 = vrot.slane %v668, 2
  %v670 = vmax.f32 %v668, %v669
  %v671 = vrot.slane %v670, 1
  %v672 = vmax.f32 %v670, %v671
  %v673 = vsel %vm568, %v486, -inf
  %v674 = vrot.slane %v673, 4
  %v675 = vmax.f32 %v673, %v674
  %v676 = vrot.slane %v675, 2
  %v677 = vmax.f32 %v675, %v676
  %v678 = vrot.slane %v677, 1
  %v679 = vmax.f32 %v677, %v678
  %v680 = vmul.f32 %v510, %v609
  %v681 = vmul.f32 %v517, %v616
  %v682 = vmax.f32 %v680, 0.0
  %v683 = vmax.f32 %v681, 0.0
  %vm686 = vcmask 1041409
  %v687 = vsel %vm686, %v683, %v682
  %v689 = vsel %vm520, %v687, -inf
  %690 = vmax.xlane.f32.xlu0 %v689
  %v691 = vpop.xlane.xlu0 %690
  %v693 = vrot.slane %v691, 1
  %v696 = vsub.f32 %v682, %v691
  %v697 = vsub.f32 %v683, %v693
  %v698 = vmul.f32 %v696, 1.442695
  %v699 = vpow.pop %v698
  %v700 = vmul.f32 %v697, 1.442695
  %v701 = vpow.pop %v700
  %v704 = vrot.slane %v701, 7
  %v705 = vsel %vm686, %v704, %v699
  %v707 = vsel %vm520, %v705, 0.0
  %708 = vadd.xlane.f32.xlu0 %v707
  %v709 = vpop.xlane.xlu0 %708
  %v711 = vrot.slane %v709, 1
  %v714 = vrcp.pop %v709
  %v715 = vmul.f32 %v699, %v714
  %v716 = vrcp.pop %v711
  %v717 = vmul.f32 %v701, %v716
  %v718 = vmul.f32 %v560, %v658
  %v719 = vmul.f32 %v567, %v665
  %v720 = vmax.f32 %v718, 0.0
  %v721 = vmax.f32 %v719, 0.0
  %v724 = vsel %vm686, %v721, %v720
  %v726 = vsel %vm636, %v724, -inf
  %727 = vmax.xlane.f32.xlu0 %v726
  %v728 = vpop.xlane.xlu0 %727
  %v730 = vrot.slane %v728, 1
  %v733 = vsub.f32 %v720, %v728
  %v734 = vsub.f32 %v721, %v730
  %v735 = vmul.f32 %v733, 1.442695
  %v736 = vpow.pop %v735
  %v737 = vmul.f32 %v734, 1.442695
  %v738 = vpow.pop %v737
  %v741 = vrot.slane %v738, 7
  %v742 = vsel %vm686, %v741, %v736
  %743 = vrot.lane.b32.xlu0 %v742, 120
  %v744 = vpop.permute.xlu0 %743
  %v746 = vsel %vm520, %v744, 0.0
  %747 = vadd.xlane.f32.xlu0 %v746
  %v748 = vpop.xlane.xlu0 %747
  %v750 = vrot.slane %v748, 1
  %v753 = vrcp.pop %v748
  %v754 = vmul.f32 %v736, %v753
  %v755 = vrcp.pop %v750
  %v756 = vmul.f32 %v738, %v755
  %v759 = vsel %vm686, %v502, %v495
  %v763 = vrot.slane %v717, 7
  %v764 = vsel %vm686, %v763, %v715
  %765 = vrot.lane.b32.xlu0 %v764, 8
  %v766 = vpop.permute.xlu0 %765
  %v770 = vsel %vm686, %v537, %v528
  %771 = vrot.lane.b32.xlu0 %v770, 16
  %v772 = vpop.permute.xlu0 %771
  %v776 = vsel %vm686, %v552, %v545
  %777 = vrot.lane.b32.xlu0 %v776, 16
  %v778 = vpop.permute.xlu0 %777
  %v782 = vrot.slane %v756, 7
  %v783 = vsel %vm686, %v782, %v754
  %784 = vrot.lane.b32.xlu0 %v783, 24
  %v785 = vpop.permute.xlu0 %784
  %v789 = vsel %vm686, %v587, %v578
  %790 = vrot.lane.b32.xlu0 %v789, 32
  %v791 = vpop.permute.xlu0 %790
  %vm793 = vcmask 64512
  %v794 = vsel %vm793, %v759, %v766
  %vm795 = vcmask 130048
  %v796 = vsel %vm795, %v794, %v772
  %vm797 = vcmask 195584
  %v798 = vsel %vm797, %v796, %v778
  %vm799 = vcmask 261120
  %v800 = vsel %vm799, %v798, %v785
  %vm801 = vcmask 326656
  %v802 = vsel %vm801, %v800, %v791
  %v805 = vsel %vm686, %v601, %v594
  %v809 = vsel %vm686, %v635, %v626
  %810 = vrot.lane.b32.xlu0 %v809, 16
  %v811 = vpop.permute.xlu0 %810
  %v815 = vsel %vm686, %v650, %v643
  %816 = vrot.lane.b32.xlu0 %v815, 16
  %v817 = vpop.permute.xlu0 %816
  %v821 = vsel %vm686, %v679, %v672
  %822 = vrot.lane.b32.xlu0 %v821, 32
  %v823 = vpop.permute.xlu0 %822
  %v825 = vsel %vm793, %v805, %v766
  %v826 = vsel %vm795, %v825, %v811
  %v827 = vsel %vm797, %v826, %v817
  %v828 = vsel %vm799, %v827, %v785
  %v829 = vsel %vm801, %v828, %v823
  %v831 = vrot.slane %v829, 6
  %vm833 = vcmask 1041408
  %v834 = vsel %vm833, %v802, %v831
  %v835 = vld [vmem:[%s1 + $0xc0] sm:$0xff]
  %v836 = vld [vmem:[%s1 + $0xc8] sm:$0xff]
  %v837 = vld [vmem:[%s1 + $0xd0] sm:$0xff]
  %v838 = vld [vmem:[%s1 + $0xd8] sm:$0xff]
  %v839 = vld [vmem:[%s1 + $0xe0] sm:$0xff]
  %v840 = vld [vmem:[%s1 + $0xe8] sm:$0xff]
  %v841 = vld [vmem:[%s1 + $0x111] sm:$0x1]
  %v842 = vlaneseq
  %v843 = vshrl.u32 %v842, 7
  %v844 = vsub.s32 0, %v843
  %v845 = vrot.slane %v841, %v844
  %vm846 = vcmask 392192
  %v848 = vsel %vm846, %v834, 0
  %850 = vmatprep.subr.mxu0 0.0
  %851 = vmatpush1.msra.mxu0 0.0
  %852 = vmatprep.subr.mxu0 0.0
  %853 = vmatpush1.msra.mxu0 0.0
  %854 = vmatprep.subr.mxu0 0.0
  %855 = vmatpush1.msra.mxu0 0.0
  %856 = vmatprep.subr.mxu0 0.0
  %857 = vmatpush1.msra.mxu0 0.0
  %858 = vmatprep.subr.mxu0 0.0
  %859 = vmatpush1.msra.mxu0 0.0
  %860 = vmatprep.subr.mxu0 0.0
  %861 = vmatpush1.msra.mxu0 0.0
  %862 = vmatprep.subr.mxu0 0.0
  %863 = vmatpush1.msra.mxu0 0.0
  %864 = vmatprep.subr.mxu0 0.0
  %865 = vmatpush1.msra.mxu0 0.0
  %866 = vmatprep.subr.mxu0 0.0
  %867 = vmatpush1.msra.mxu0 0.0
  %868 = vmatprep.subr.mxu0 0.0
  %869 = vmatpush1.msra.mxu0 0.0
  %870 = vmatprep.subr.mxu0 0.0
  %871 = vmatpush1.msra.mxu0 %v840
  %872 = vmatprep.subr.mxu0 0.0
  %873 = vmatpush1.msra.mxu0 %v839
  %874 = vmatprep.subr.mxu0 0.0
  %875 = vmatpush1.msra.mxu0 %v838
  %876 = vmatprep.subr.mxu0 0.0
  %877 = vmatpush1.msra.mxu0 %v837
  %878 = vmatprep.subr.mxu0 0.0
  %879 = vmatpush1.msra.mxu0 %v836
  %880 = vmatprep.subr.mxu0 0.0
  %881 = vmatpush1.msra.mxu0 %v835
  %882 = vmatprep.subr.mxu0 0.0
  %883 = vmatpush2.msra.mxu0 0.0
  %884 = vmatprep.subr.mxu0 0.0
  %885 = vmatpush2.msra.mxu0 0.0
  %886 = vmatprep.subr.mxu0 0.0
  %887 = vmatpush2.msra.mxu0 0.0
  %888 = vmatprep.subr.mxu0 0.0
  %889 = vmatpush2.msra.mxu0 0.0
  %890 = vmatprep.subr.mxu0 0.0
  %891 = vmatpush2.msra.mxu0 0.0
  %892 = vmatprep.subr.mxu0 0.0
  %893 = vmatpush2.msra.mxu0 0.0
  %894 = vmatprep.subr.mxu0 0.0
  %895 = vmatpush2.msra.mxu0 0.0
  %896 = vmatprep.subr.mxu0 0.0
  %897 = vmatpush2.msra.mxu0 0.0
  %898 = vmatprep.subr.mxu0 0.0
  %899 = vmatpush2.msra.mxu0 0.0
  %900 = vmatprep.subr.mxu0 0.0
  %901 = vmatpush2.msra.mxu0 0.0
  %902 = vmatprep.subr.mxu0 0.0
  %903 = vmatpush2.msra.mxu0 0.0
  %904 = vmatprep.subr.mxu0 0.0
  %905 = vmatpush2.msra.mxu0 0.0
  %906 = vmatprep.subr.mxu0 0.0
  %907 = vmatpush2.msra.mxu0 0.0
  %908 = vmatprep.subr.mxu0 0.0
  %909 = vmatpush2.msra.mxu0 0.0
  %910 = vmatprep.subr.mxu0 0.0
  %911 = vmatpush2.msra.mxu0 0.0
  %912 = vmatprep.subr.mxu0 0.0
  %913 = vmatpush2.msra.mxu0 0.0
  %914 = vmatprep.mubr.f32.mxu0 0.0
  %915 = vmatmul.mubr.f32.gmra.mxu0 %v848
  %v916 = vpop.f32.mrf.mxu0
  %v917 = vadd.f32 %v845, %v916
  %v918 = vpop.f32.mrf.mxu0
  %919 = vdwg.mxu0
  %v920 = vmax.f32 %v917, 0.0
  %v921 = vld [vmem:[%s1 + $0xf0] sm:$0xff]
  %v922 = vld [vmem:[%s1 + $0xf8] sm:$0xff]
  %v923 = vld [vmem:[%s1 + $0x112] sm:$0x1]
  %v924 = vlaneseq
  %v925 = vshrl.u32 %v924, 7
  %v926 = vsub.s32 0, %v925
  %v927 = vrot.slane %v923, %v926
  %v929 = vsel %vm795, %v920, 0
  %931 = vmatprep.subr.mxu0 0.0
  %932 = vmatpush1.msra.mxu0 0.0
  %933 = vmatprep.subr.mxu0 0.0
  %934 = vmatpush1.msra.mxu0 0.0
  %935 = vmatprep.subr.mxu0 0.0
  %936 = vmatpush1.msra.mxu0 0.0
  %937 = vmatprep.subr.mxu0 0.0
  %938 = vmatpush1.msra.mxu0 0.0
  %939 = vmatprep.subr.mxu0 0.0
  %940 = vmatpush1.msra.mxu0 0.0
  %941 = vmatprep.subr.mxu0 0.0
  %942 = vmatpush1.msra.mxu0 0.0
  %943 = vmatprep.subr.mxu0 0.0
  %944 = vmatpush1.msra.mxu0 0.0
  %945 = vmatprep.subr.mxu0 0.0
  %946 = vmatpush1.msra.mxu0 0.0
  %947 = vmatprep.subr.mxu0 0.0
  %948 = vmatpush1.msra.mxu0 0.0
  %949 = vmatprep.subr.mxu0 0.0
  %950 = vmatpush1.msra.mxu0 0.0
  %951 = vmatprep.subr.mxu0 0.0
  %952 = vmatpush1.msra.mxu0 0.0
  %953 = vmatprep.subr.mxu0 0.0
  %954 = vmatpush1.msra.mxu0 0.0
  %955 = vmatprep.subr.mxu0 0.0
  %956 = vmatpush1.msra.mxu0 0.0
  %957 = vmatprep.subr.mxu0 0.0
  %958 = vmatpush1.msra.mxu0 0.0
  %959 = vmatprep.subr.mxu0 0.0
  %960 = vmatpush1.msra.mxu0 %v922
  %961 = vmatprep.subr.mxu0 0.0
  %962 = vmatpush1.msra.mxu0 %v921
  %963 = vmatprep.subr.mxu0 0.0
  %964 = vmatpush2.msra.mxu0 0.0
  %965 = vmatprep.subr.mxu0 0.0
  %966 = vmatpush2.msra.mxu0 0.0
  %967 = vmatprep.subr.mxu0 0.0
  %968 = vmatpush2.msra.mxu0 0.0
  %969 = vmatprep.subr.mxu0 0.0
  %970 = vmatpush2.msra.mxu0 0.0
  %971 = vmatprep.subr.mxu0 0.0
  %972 = vmatpush2.msra.mxu0 0.0
  %973 = vmatprep.subr.mxu0 0.0
  %974 = vmatpush2.msra.mxu0 0.0
  %975 = vmatprep.subr.mxu0 0.0
  %976 = vmatpush2.msra.mxu0 0.0
  %977 = vmatprep.subr.mxu0 0.0
  %978 = vmatpush2.msra.mxu0 0.0
  %979 = vmatprep.subr.mxu0 0.0
  %980 = vmatpush2.msra.mxu0 0.0
  %981 = vmatprep.subr.mxu0 0.0
  %982 = vmatpush2.msra.mxu0 0.0
  %983 = vmatprep.subr.mxu0 0.0
  %984 = vmatpush2.msra.mxu0 0.0
  %985 = vmatprep.subr.mxu0 0.0
  %986 = vmatpush2.msra.mxu0 0.0
  %987 = vmatprep.subr.mxu0 0.0
  %988 = vmatpush2.msra.mxu0 0.0
  %989 = vmatprep.subr.mxu0 0.0
  %990 = vmatpush2.msra.mxu0 0.0
  %991 = vmatprep.subr.mxu0 0.0
  %992 = vmatpush2.msra.mxu0 0.0
  %993 = vmatprep.subr.mxu0 0.0
  %994 = vmatpush2.msra.mxu0 0.0
  %995 = vmatprep.mubr.f32.mxu0 0.0
  %996 = vmatmul.mubr.f32.gmra.mxu0 %v929
  %v997 = vpop.f32.mrf.mxu0
  %v998 = vadd.f32 %v927, %v997
  %v999 = vpop.f32.mrf.mxu0
  %1000 = vdwg.mxu0
  %v1001 = vmax.f32 %v998, 0.0
  %v1002 = vld [vmem:[%s1 + $0x100] sm:$0xff]
  %v1003 = vld [vmem:[%s1 + $0x108] sm:$0xff]
  %v1004 = vld [vmem:[%s1 + $0x113] sm:$0x1]
  %v1005 = vlaneseq
  %v1006 = vshrl.u32 %v1005, 7
  %v1007 = vsub.s32 0, %v1006
  %v1008 = vrot.slane %v1004, %v1007
  %v1010 = vsel %vm795, %v1001, 0
  %1012 = vmatprep.subr.mxu0 0.0
  %1013 = vmatpush1.msra.mxu0 0.0
  %1014 = vmatprep.subr.mxu0 0.0
  %1015 = vmatpush1.msra.mxu0 0.0
  %1016 = vmatprep.subr.mxu0 0.0
  %1017 = vmatpush1.msra.mxu0 0.0
  %1018 = vmatprep.subr.mxu0 0.0
  %1019 = vmatpush1.msra.mxu0 0.0
  %1020 = vmatprep.subr.mxu0 0.0
  %1021 = vmatpush1.msra.mxu0 0.0
  %1022 = vmatprep.subr.mxu0 0.0
  %1023 = vmatpush1.msra.mxu0 0.0
  %1024 = vmatprep.subr.mxu0 0.0
  %1025 = vmatpush1.msra.mxu0 0.0
  %1026 = vmatprep.subr.mxu0 0.0
  %1027 = vmatpush1.msra.mxu0 0.0
  %1028 = vmatprep.subr.mxu0 0.0
  %1029 = vmatpush1.msra.mxu0 0.0
  %1030 = vmatprep.subr.mxu0 0.0
  %1031 = vmatpush1.msra.mxu0 0.0
  %1032 = vmatprep.subr.mxu0 0.0
  %1033 = vmatpush1.msra.mxu0 0.0
  %1034 = vmatprep.subr.mxu0 0.0
  %1035 = vmatpush1.msra.mxu0 0.0
  %1036 = vmatprep.subr.mxu0 0.0
  %1037 = vmatpush1.msra.mxu0 0.0
  %1038 = vmatprep.subr.mxu0 0.0
  %1039 = vmatpush1.msra.mxu0 0.0
  %1040 = vmatprep.subr.mxu0 0.0
  %1041 = vmatpush1.msra.mxu0 %v1003
  %1042 = vmatprep.subr.mxu0 0.0
  %1043 = vmatpush1.msra.mxu0 %v1002
  %1044 = vmatprep.subr.mxu0 0.0
  %1045 = vmatpush2.msra.mxu0 0.0
  %1046 = vmatprep.subr.mxu0 0.0
  %1047 = vmatpush2.msra.mxu0 0.0
  %1048 = vmatprep.subr.mxu0 0.0
  %1049 = vmatpush2.msra.mxu0 0.0
  %1050 = vmatprep.subr.mxu0 0.0
  %1051 = vmatpush2.msra.mxu0 0.0
  %1052 = vmatprep.subr.mxu0 0.0
  %1053 = vmatpush2.msra.mxu0 0.0
  %1054 = vmatprep.subr.mxu0 0.0
  %1055 = vmatpush2.msra.mxu0 0.0
  %1056 = vmatprep.subr.mxu0 0.0
  %1057 = vmatpush2.msra.mxu0 0.0
  %1058 = vmatprep.subr.mxu0 0.0
  %1059 = vmatpush2.msra.mxu0 0.0
  %1060 = vmatprep.subr.mxu0 0.0
  %1061 = vmatpush2.msra.mxu0 0.0
  %1062 = vmatprep.subr.mxu0 0.0
  %1063 = vmatpush2.msra.mxu0 0.0
  %1064 = vmatprep.subr.mxu0 0.0
  %1065 = vmatpush2.msra.mxu0 0.0
  %1066 = vmatprep.subr.mxu0 0.0
  %1067 = vmatpush2.msra.mxu0 0.0
  %1068 = vmatprep.subr.mxu0 0.0
  %1069 = vmatpush2.msra.mxu0 0.0
  %1070 = vmatprep.subr.mxu0 0.0
  %1071 = vmatpush2.msra.mxu0 0.0
  %1072 = vmatprep.subr.mxu0 0.0
  %1073 = vmatpush2.msra.mxu0 0.0
  %1074 = vmatprep.subr.mxu0 0.0
  %1075 = vmatpush2.msra.mxu0 0.0
  %1076 = vmatprep.mubr.f32.mxu0 0.0
  %1077 = vmatmul.mubr.f32.gmra.mxu0 %v1010
  %v1078 = vpop.f32.mrf.mxu0
  %v1079 = vadd.f32 %v1008, %v1078
  %v1080 = vpop.f32.mrf.mxu0
  %1081 = vdwg.mxu0
  %vm1082 = vcmask 27648
  %1083 = vst.msk [vmem:[%s2] sm:$0xf] %vm1082, %v1079
  // Predicated region
  $region10: #{siamese_forward.1} parent=0 // pred_check
    _
  $region11: #{siamese_forward.1} parent=0 // pred_check_branch
    %1085 = sbr.rel (0) target = $region13
  $region12: #{siamese_forward.1} parent=0 // pred_region
    _
  $region13: #{siamese_forward.1} parent=0 // pred_fallthru
    _
  // Predicated region
  $region14: #{siamese_forward.1} parent=0 // pred_check
    _
  $region15: #{siamese_forward.1} parent=0 // pred_check_branch
    %1087 = sbr.rel (0) target = $region17
  $region16: #{siamese_forward.1} parent=0 // pred_region
    _
  $region17: #{siamese_forward.1} parent=0 // pred_fallthru
    _

</llo_original>
